<compile_context>
chip_gen: v7x
topology: tpu7x:2x2x1
jax: 0.10.0
libtpu: 0.0.40
codegen_flags: <defaults>
</compile_context>

<pallas_src>
import functools

import jax
import jax.numpy as jnp
from jax.experimental import pallas as pl
from jax.experimental.pallas import tpu as pltpu

GAMMA = 2            # module default
SIZE_AVERAGE = True  # module default


def _focal_weight(q, gamma):
    """(1 - p)^gamma without a float pow when gamma is a small integer."""
    if float(gamma).is_integer() and 0 <= int(gamma) <= 8:
        w = jnp.ones_like(q)
        for _ in range(int(gamma)):
            w = w * q
        return w
    return q ** jnp.float32(gamma)


def _focal_loss_kernel(logits_ref, targets_ref, alpha_t_ref, o_ref, *,
                       n_true, tile_rows, gamma, size_average):
    t_idx = pl.program_id(0)

    # --- accumulator init (output block is resident across the grid) -------
    @pl.when(t_idx == 0)
    def _init():
        o_ref[...] = jnp.zeros_like(o_ref)

    x = logits_ref[...].astype(jnp.float32)        # (tile_rows, C)
    tgt = targets_ref[...]                         # (tile_rows, 1) int32
    a_t = alpha_t_ref[...].astype(jnp.float32)     # (tile_rows, 1) = alpha[target]
    rows, c = x.shape

    # one-hot class mask (equivalent of scatter_(1, ids, 1.0))
    col = jax.lax.broadcasted_iota(jnp.int32, (rows, c), 1)
    mask = (col == tgt).astype(jnp.float32)        # (rows, C)

    # log-sum-exp:  log softmax(x)[target] = x_t - (m + log(sum exp(x - m)))
    m = jnp.max(x, axis=1, keepdims=True)                      # (rows, 1)
    s = jnp.sum(jnp.exp(x - m), axis=1, keepdims=True)         # (rows, 1)
    lse = m + jnp.log(s)                                       # (rows, 1)
    x_t = jnp.sum(x * mask, axis=1, keepdims=True)             # (rows, 1)
    log_p = x_t - lse                                          # (rows, 1)
    probs = jnp.exp(log_p)                                     # (rows, 1)

    w = _focal_weight(1.0 - probs, gamma)                      # (1-p)^gamma
    batch_loss = -a_t * w * log_p                              # (rows, 1)

    # mask out padded tail rows (so the reduction only sees true observations)
    row_idx = t_idx * tile_rows + jax.lax.broadcasted_iota(
        jnp.int32, (rows, 1), 0)
    batch_loss = jnp.where(row_idx < n_true, batch_loss, 0.0)

    o_ref[...] += jnp.sum(batch_loss, axis=0, keepdims=True)   # (1, 1)

    # --- finalize: mean over the TRUE batch size ---------------------------
    @pl.when(t_idx == pl.num_programs(0) - 1)
    def _finish():
        if size_average:
            o_ref[...] = o_ref[...] * jnp.float32(1.0 / n_true)


def focal_loss(logits, targets, alpha, *, gamma=GAMMA,
               size_average=SIZE_AVERAGE, max_tile_rows=2048):
    """logits: (N, C) float (native dtype), targets: (N,) int, alpha: (C,) -> scalar."""
    n, c = logits.shape
    targets = targets.astype(jnp.int32)
    alpha = jnp.asarray(alpha, dtype=jnp.float32).reshape(-1)

    # Gather alpha[target] once here (N-length gather) instead of a second
    # (N, C) masked reduce inside the kernel.
    alpha_t = alpha[targets].reshape(n, 1)

    def round_up(v, m):
        return (v + m - 1) // m * m

    # Row tile sized from the lane-padded footprint: rows x 128 lanes x 4 B
    # x 2 buffers; 2048 rows => ~2 MiB of double-buffered logits traffic,
    # comfortably inside v7x's smaller VMEM while big enough to hide the
    # per-step pipeline overhead on all generations.
    tile_rows = min(max_tile_rows, round_up(n, 16))
    padded_n = round_up(n, tile_rows)
    num_tiles = padded_n // tile_rows

    if padded_n != n:
        pad = padded_n - n
        logits = jnp.pad(logits, ((0, pad), (0, 0)))
        targets = jnp.pad(targets, ((0, pad),))
        alpha_t = jnp.pad(alpha_t, ((0, pad), (0, 0)))

    targets2d = targets.reshape(padded_n, 1)

    kernel = functools.partial(
        _focal_loss_kernel, n_true=n, tile_rows=tile_rows,
        gamma=gamma, size_average=size_average)

    itemsize = jnp.dtype(logits.dtype).itemsize
    cost = pl.CostEstimate(
        flops=padded_n * c * 6 + padded_n * 10,
        transcendentals=padded_n * (c + 2),          # exp per class + log + exp per row
        bytes_accessed=padded_n * c * itemsize + padded_n * 8 + 4,
    )

    out = pl.pallas_call(
        kernel,
        out_shape=jax.ShapeDtypeStruct((1, 1), jnp.float32),
        grid=(num_tiles,),
        in_specs=[
            pl.BlockSpec((tile_rows, c), lambda i: (i, 0)),   # logits tile
            pl.BlockSpec((tile_rows, 1), lambda i: (i, 0)),   # target ids
            pl.BlockSpec((tile_rows, 1), lambda i: (i, 0)),   # alpha[target]
        ],
        out_specs=pl.BlockSpec((1, 1), lambda i: (0, 0)),     # resident accumulator
        compiler_params=pltpu.CompilerParams(
            dimension_semantics=("arbitrary",),               # reduction axis
            vmem_limit_bytes=32 * 1024 * 1024,
        ),
        cost_estimate=cost,
    )(logits, targets2d, alpha_t)
    return out[0, 0]


def _reference(logits, targets, alpha, gamma=GAMMA, size_average=SIZE_AVERAGE):
    """Pure-JAX reference matching the PyTorch module."""
    n = logits.shape[0]
    log_p_all = jax.nn.log_softmax(logits.astype(jnp.float32), axis=1)
    log_p = log_p_all[jnp.arange(n), targets]
    probs = jnp.exp(log_p)
    batch_loss = -alpha[targets] * (1.0 - probs) ** gamma * log_p
    return jnp.mean(batch_loss) if size_average else jnp.sum(batch_loss)


if __name__ == "__main__":
    key = jax.random.PRNGKey(0)
    N, C = 8, 4  # small synthetic shapes: batch=8, class_num=4

    k1, k2, k3, k4 = jax.random.split(key, 4)
    logits = jax.random.normal(k1, (N, C), dtype=jnp.float32)
    targets = jax.random.randint(k2, (N,), 0, C, dtype=jnp.int32)

    # Deterministic parameter init: alpha = ones(class_num, 1) as in __init__.
    alpha = jnp.ones((C,), dtype=jnp.float32)

    loss = focal_loss(logits, targets, alpha)
    jax.block_until_ready(loss)
    ref = _reference(logits, targets, alpha)
    assert jnp.allclose(loss, ref, rtol=1e-5, atol=1e-6), (loss, ref)

    # Second small check: multi-tile grid + padded tail masking (N=40, tile=16).
    N2 = 40
    logits2 = jax.random.normal(k3, (N2, C), dtype=jnp.float32) * 3.0
    targets2 = jax.random.randint(k4, (N2,), 0, C, dtype=jnp.int32)
    loss2 = focal_loss(logits2, targets2, alpha, max_tile_rows=16)
    jax.block_until_ready(loss2)
    ref2 = _reference(logits2, targets2, alpha)
    assert jnp.allclose(loss2, ref2, rtol=1e-5, atol=1e-6), (loss2, ref2)

    print("KERNEL_OK")
</pallas_src>

<mosaic_0001>
module attributes {stable_mosaic.version = 11 : i64} {
  func.func @_focal_loss_kernel(%arg0: i32, %arg1: memref<16x4xf32, #tpu.memory_space<vmem>>, %arg2: memref<16x1xi32, #tpu.memory_space<vmem>>, %arg3: memref<16x1xf32, #tpu.memory_space<vmem>>, %arg4: memref<1x1xf32, #tpu.memory_space<vmem>>) attributes {dimension_semantics = [#tpu.dimension_semantics<arbitrary>], iteration_bounds = array<i64: 1>, scalar_prefetch = 0 : i64, scratch_operands = 0 : i64, tpu.core_type = #tpu.core_type<tc>, window_params = [{transform_indices = @transform_0, window_bounds = array<i64: 16, 4>}, {transform_indices = @transform_1, window_bounds = array<i64: 16, 1>}, {transform_indices = @transform_2, window_bounds = array<i64: 16, 1>}, {pipeline_mode = #tpu.pipeline_mode<synchronous>, transform_indices = @transform_3, window_bounds = array<i64: 1, 1>}]} {
    %c0_i32 = arith.constant 0 : i32
    %0 = arith.cmpi eq, %arg0, %c0_i32 : i32
    %1 = arith.extui %0 : i1 to i32
    %c0_i32_0 = arith.constant 0 : i32
    %2 = arith.cmpi ne, %1, %c0_i32_0 : i32
    scf.if %2 {
      %cst_19 = arith.constant 0.000000e+00 : f32
      %50 = vector.broadcast %cst_19 : f32 to vector<1x1xf32>
      %c0_20 = arith.constant 0 : index
      %c0_21 = arith.constant 0 : index
      %51 = vector.load %arg4[%c0_20, %c0_21] : memref<1x1xf32, #tpu.memory_space<vmem>>, vector<1x1xf32>
      tpu.vector_store %arg4[%c0_20, %c0_21], %50 {strides = array<i32>} : memref<1x1xf32, #tpu.memory_space<vmem>>, vector<1x1xf32>,
    } else {
    }
    %c0 = arith.constant 0 : index
    %c0_1 = arith.constant 0 : index
    %3 = vector.load %arg1[%c0, %c0_1] : memref<16x4xf32, #tpu.memory_space<vmem>>, vector<16x4xf32>
    %c0_2 = arith.constant 0 : index
    %c0_3 = arith.constant 0 : index
    %4 = vector.load %arg2[%c0_2, %c0_3] : memref<16x1xi32, #tpu.memory_space<vmem>>, vector<16x1xi32>
    %c0_4 = arith.constant 0 : index
    %c0_5 = arith.constant 0 : index
    %5 = vector.load %arg3[%c0_4, %c0_5] : memref<16x1xf32, #tpu.memory_space<vmem>>, vector<16x1xf32>
    %6 = tpu.iota {dimensions = array<i32: 1>} : vector<16x4xi32>
    %7 = vector.broadcast %4 : vector<16x1xi32> to vector<16x4xi32>
    %8 = arith.cmpi eq, %6, %7 : vector<16x4xi32>
    %9 = arith.extui %8 : vector<16x4xi1> to vector<16x4xi32>
    %10 = arith.sitofp %9 : vector<16x4xi32> to vector<16x4xf32>
    %cst = arith.constant dense<0xFF800000> : vector<16xf32>
    %11 = vector.multi_reduction <maximumf>, %3, %cst [1] : vector<16x4xf32> to vector<16xf32>
    %12 = vector.shape_cast %11 : vector<16xf32> to vector<16x1xf32>
    %13 = vector.broadcast %12 : vector<16x1xf32> to vector<16x4xf32>
    %14 = arith.subf %3, %13 : vector<16x4xf32>
    %15 = math.exp %14 : vector<16x4xf32>
    %cst_6 = arith.constant dense<0.000000e+00> : vector<16xf32>
    %16 = vector.multi_reduction <add>, %15, %cst_6 [1] : vector<16x4xf32> to vector<16xf32>
    %17 = vector.shape_cast %16 : vector<16xf32> to vector<16x1xf32>
    %18 = math.log %17 : vector<16x1xf32>
    %19 = arith.addf %12, %18 : vector<16x1xf32>
    %20 = arith.mulf %3, %10 : vector<16x4xf32>
    %cst_7 = arith.constant dense<0.000000e+00> : vector<16xf32>
    %21 = vector.multi_reduction <add>, %20, %cst_7 [1] : vector<16x4xf32> to vector<16xf32>
    %22 = vector.shape_cast %21 : vector<16xf32> to vector<16x1xf32>
    %23 = arith.subf %22, %19 : vector<16x1xf32>
    %24 = math.exp %23 : vector<16x1xf32>
    %cst_8 = arith.constant 1.000000e+00 : f32
    %25 = vector.broadcast %cst_8 : f32 to vector<16x1xf32>
    %26 = arith.subf %25, %24 : vector<16x1xf32>
    %cst_9 = arith.constant 1.000000e+00 : f32
    %27 = vector.broadcast %cst_9 : f32 to vector<16x1xf32>
    %28 = arith.mulf %27, %26 : vector<16x1xf32>
    %29 = arith.mulf %28, %26 : vector<16x1xf32>
    %cst_10 = arith.constant 0.000000e+00 : f32
    %30 = vector.broadcast %cst_10 : f32 to vector<16x1xf32>
    %31 = arith.subf %30, %5 : vector<16x1xf32>
    %32 = arith.mulf %31, %29 : vector<16x1xf32>
    %33 = arith.mulf %32, %23 : vector<16x1xf32>
    %c16_i32 = arith.constant 16 : i32
    %34 = arith.muli %arg0, %c16_i32 : i32
    %35 = tpu.iota {dimensions = array<i32: 0>} : vector<16x1xi32>
    %36 = vector.broadcast %34 : i32 to vector<16x1xi32>
    %37 = arith.addi %36, %35 : vector<16x1xi32>
    %c8_i32 = arith.constant 8 : i32
    %38 = vector.broadcast %c8_i32 : i32 to vector<16x1xi32>
    %39 = arith.cmpi slt, %37, %38 : vector<16x1xi32>
    %cst_11 = arith.constant 0.000000e+00 : f32
    %40 = vector.broadcast %cst_11 : f32 to vector<16x1xf32>
    %41 = arith.select %39, %33, %40 : vector<16x1xi1>, vector<16x1xf32>
    %c0_12 = arith.constant 0 : index
    %c0_13 = arith.constant 0 : index
    %42 = vector.load %arg4[%c0_12, %c0_13] : memref<1x1xf32, #tpu.memory_space<vmem>>, vector<1x1xf32>
    %cst_14 = arith.constant dense<0.000000e+00> : vector<1xf32>
    %43 = vector.multi_reduction <add>, %41, %cst_14 [0] : vector<16x1xf32> to vector<1xf32>
    %44 = vector.shape_cast %43 : vector<1xf32> to vector<1x1xf32>
    %45 = arith.addf %42, %44 : vector<1x1xf32>
    %c0_15 = arith.constant 0 : index
    %c0_16 = arith.constant 0 : index
    %46 = vector.load %arg4[%c0_15, %c0_16] : memref<1x1xf32, #tpu.memory_space<vmem>>, vector<1x1xf32>
    tpu.vector_store %arg4[%c0_15, %c0_16], %45 {strides = array<i32>} : memref<1x1xf32, #tpu.memory_space<vmem>>, vector<1x1xf32>,
    %c0_i32_17 = arith.constant 0 : i32
    %47 = arith.cmpi eq, %arg0, %c0_i32_17 : i32
    %48 = arith.extui %47 : i1 to i32
    %c0_i32_18 = arith.constant 0 : i32
    %49 = arith.cmpi ne, %48, %c0_i32_18 : i32
    scf.if %49 {
      %c0_19 = arith.constant 0 : index
      %c0_20 = arith.constant 0 : index
      %50 = vector.load %arg4[%c0_19, %c0_20] : memref<1x1xf32, #tpu.memory_space<vmem>>, vector<1x1xf32>
      %cst_21 = arith.constant 1.250000e-01 : f32
      %51 = vector.broadcast %cst_21 : f32 to vector<1x1xf32>
      %52 = arith.mulf %50, %51 : vector<1x1xf32>
      %c0_22 = arith.constant 0 : index
      %c0_23 = arith.constant 0 : index
      %53 = vector.load %arg4[%c0_22, %c0_23] : memref<1x1xf32, #tpu.memory_space<vmem>>, vector<1x1xf32>
      tpu.vector_store %arg4[%c0_22, %c0_23], %52 {strides = array<i32>} : memref<1x1xf32, #tpu.memory_space<vmem>>, vector<1x1xf32>,
    } else {
    }
    return
  }
  func.func @transform_0(%arg0: i32) -> (i32, i32) {
    %c0_i32 = arith.constant 0 : i32
    %c0_i32_0 = arith.constant 0 : i32
    return %arg0, %c0_i32 : i32, i32
  }
  func.func @transform_1(%arg0: i32) -> (i32, i32) {
    %c0_i32 = arith.constant 0 : i32
    %c0_i32_0 = arith.constant 0 : i32
    return %arg0, %c0_i32 : i32, i32
  }
  func.func @transform_2(%arg0: i32) -> (i32, i32) {
    %c0_i32 = arith.constant 0 : i32
    %c0_i32_0 = arith.constant 0 : i32
    return %arg0, %c0_i32 : i32, i32
  }
  func.func @transform_3(%arg0: i32) -> (i32, i32) {
    %c0_i32 = arith.constant 0 : i32
    %c0_i32_0 = arith.constant 0 : i32
    %c0_i32_1 = arith.constant 0 : i32
    return %c0_i32, %c0_i32_0 : i32, i32
  }
}

</mosaic_0001>

<llo_original>
// kernel: tpu_custom_call.1
$region0: #{tpu_custom_call.1}
  #allocation0 [shape = 'u32[]', space=smem, size = 0x4, offset = 0x4, fixed_abs, tag = 'smem constant byte address 0x4 - core index']
  #allocation1 [shape = 'u32[144,128]{1,0:T(1,128)}', space=vmem, size = 0x12000, scoped, tag = 'internal scratch']
  %s0 = inlined_call_operand.vmem [shape: f32[16,4], index: 0, kind: input, shape index: {}]
  %s1 = inlined_call_operand.vmem [shape: s32[16,1], index: 1, kind: input, shape index: {}]
  %s2 = inlined_call_operand.vmem [shape: f32[16,1], index: 2, kind: input, shape index: {}]
  %s3 = inlined_call_operand.hbm [shape: f32[1,1], index: 3, kind: output, shape index: {}]
  %s4 = sld [smem:[#allocation0]]
  $region30: #{tpu_custom_call.1} parent=0
    _
  %s6 = ssub.s32 1, %s4
  %s7 = scalar_select 0, %s6, %s4
  $region1: #{tpu_custom_call.1} parent=0
    #allocation2 [shape = 'u8[512]{0}', space=vmem, size = 0x400, scoped, tag = 'output window, operand 0, single buffered']
    #allocation3 [shape = 's32[1]{0}', space=sflag, size = 0x4, scoped, tag = 'scoped memory for tpu_custom_call.1']
    %8 = vsyncpa [#allocation3], 0
    // Predicated region
    $region2: #{tpu_custom_call.1} parent=1 // pred_check
      _
    $region3: #{tpu_custom_call.1} parent=1 // pred_check_branch
      %10 = sbr.rel (0) target = $region5
    $region4: #{tpu_custom_call.1} parent=1 // pred_region
      _
    $region5: #{tpu_custom_call.1} parent=1 // pred_fallthru
      _
    // Predicated region
    $region6: #{tpu_custom_call.1} parent=1 // pred_check
      _
    $region7: #{tpu_custom_call.1} parent=1 // pred_check_branch
      %12 = sbr.rel (0) target = $region9
    $region8: #{tpu_custom_call.1} parent=1 // pred_region
      _
    $region9: #{tpu_custom_call.1} parent=1 // pred_fallthru
      _
    // Predicated region
    $region10: #{tpu_custom_call.1} parent=1 // pred_check
      _
    $region11: #{tpu_custom_call.1} parent=1 // pred_check_branch
      %14 = sbr.rel (0) target = $region13
    $region12: #{tpu_custom_call.1} parent=1 // pred_region
      _
    $region13: #{tpu_custom_call.1} parent=1 // pred_fallthru
      _
    %p15 = scmp.eq.s32.totalorder 0, 0
    // Predicated region
    $region14: #{tpu_custom_call.1} parent=1 // pred_check
      %p16 = pneg %p15
    $region15: #{tpu_custom_call.1} parent=1 // pred_check_branch
      %18 = sbr.rel (%p16) target = $region17
    $region16: #{tpu_custom_call.1} parent=1 // pred_region
      %vm19 = vcmask 0
      %20 = vst.msk [vmem:[#allocation2] sm:$0x1] %vm19, 0.0
    $region17: #{tpu_custom_call.1} parent=1 // pred_fallthru
      _
    %v21 = vld [vmem:[%s0] sm:$0xff]
    %v22 = vld [vmem:[%s0 + $0x8] sm:$0xff]
    %v23 = vld [vmem:[%s1] sm:$0xff]
    %v24 = vld [vmem:[%s1 + $0x8] sm:$0xff]
    %v25 = vld [vmem:[%s2] sm:$0xff]
    %v26 = vld [vmem:[%s2 + $0x8] sm:$0xff]
    %v27 = vlaneseq
    %v28 = vand.u32 %v27, 127
    %29 = vset.pattern.permute.xlu0 0
    %30 = vperm.xlu0 %29, %v23
    %v31 = vpop.permute.xlu0 %30
    %32 = vset.pattern.permute.xlu0 0
    %33 = vperm.xlu0 %32, %v24
    %v34 = vpop.permute.xlu0 %33
    %vm35 = vcmp.eq.s32.totalorder %v28, %v31
    %vm36 = vcmp.eq.s32.totalorder %v28, %v34
    %v37 = vsel %vm35, 1, 0
    %v38 = vsel %vm36, 1, 0
    %v39 = vcvt.s32.f32 %v37
    %v40 = vcvt.s32.f32 %v38
    %vm41 = vcmask 31744
    %v42 = vsel %vm41, %v21, -inf
    %43 = vmax.xlane.f32.xlu0 %v42
    %v44 = vpop.xlane.xlu0 %43
    %v45 = vsel %vm41, %v22, -inf
    %46 = vmax.xlane.f32.xlu0 %v45
    %v47 = vpop.xlane.xlu0 %46
    %v48 = vsub.f32 %v21, %v44
    %v49 = vsub.f32 %v22, %v47
    %v50 = vmul.f32 %v48, 1.442695
    %v51 = vpow.pop %v50
    %v52 = vmul.f32 %v49, 1.442695
    %v53 = vpow.pop %v52
    %v54 = vsel %vm41, %v51, 0.0
    %55 = vadd.xlane.f32.xlu0 %v54
    %v56 = vpop.xlane.xlu0 %55
    %v57 = vsel %vm41, %v53, 0.0
    %58 = vadd.xlane.f32.xlu0 %v57
    %v59 = vpop.xlane.xlu0 %58
    %v60 = vlog2.pop %v56
    %v61 = vmul.f32 %v60, 0.6931472
    %v62 = vlog2.pop %v59
    %v63 = vmul.f32 %v62, 0.6931472
    %v64 = vadd.f32 %v44, %v61
    %v65 = vadd.f32 %v47, %v63
    %v66 = vmul.f32 %v21, %v39
    %v67 = vmul.f32 %v22, %v40
    %v68 = vsel %vm41, %v66, 0.0
    %69 = vadd.xlane.f32.xlu0 %v68
    %v70 = vpop.xlane.xlu0 %69
    %v71 = vsel %vm41, %v67, 0.0
    %72 = vadd.xlane.f32.xlu0 %v71
    %v73 = vpop.xlane.xlu0 %72
    %v74 = vsub.f32 %v70, %v64
    %v75 = vsub.f32 %v73, %v65
    %v76 = vmul.f32 %v74, 1.442695
    %v77 = vpow.pop %v76
    %v78 = vmul.f32 %v75, 1.442695
    %v79 = vpow.pop %v78
    %v80 = vsub.f32 1.0, %v77
    %v81 = vsub.f32 1.0, %v79
    %v82 = vmul.f32 %v80, %v80
    %v83 = vmul.f32 %v81, %v81
    %v84 = vsub.f32 0.0, %v25
    %v85 = vsub.f32 0.0, %v26
    %v86 = vmul.f32 %v84, %v82
    %v87 = vmul.f32 %v85, %v83
    %v88 = vmul.f32 %v86, %v74
    %v89 = vmul.f32 %v87, %v75
    %s90 = smul.u32 0, 16
    %v91 = vlaneseq
    %v92 = vshrl.u32 %v91, 7
    %v93 = vadd.s32 %v92, 8
    %v94 = vstv %s90
    %v95 = vadd.s32 %v94, %v92
    %v96 = vadd.s32 %v94, %v93
    %vm97 = vcmp.lt.s32.totalorder %v95, 8
    %vm98 = vcmp.lt.s32.totalorder %v96, 8
    %v99 = vsel %vm97, %v88, 0.0
    %v100 = vsel %vm98, %v89, 0.0
    %v101 = vld [vmem:[#allocation2] sm:$0x1]
    %vm102 = vcmask 7168
    %v103 = vsel %vm102, %v99, 0.0
    %v104 = vsel %vm102, %v100, 0.0
    %v105 = vadd.f32 %v103, %v104
    %v106 = vrot.slane %v105, 4
    %v107 = vadd.f32 %v105, %v106
    %v108 = vrot.slane %v107, 2
    %v109 = vadd.f32 %v107, %v108
    %v110 = vrot.slane %v109, 1
    %v111 = vadd.f32 %v109, %v110
    %v112 = vadd.f32 %v101, %v111
    %vm113 = vcmask 0
    %114 = vst.msk [vmem:[#allocation2] sm:$0x1] %vm113, %v112
    // Predicated region
    $region18: #{tpu_custom_call.1} parent=1 // pred_check
      %p115 = pneg %p15
    $region19: #{tpu_custom_call.1} parent=1 // pred_check_branch
      %117 = sbr.rel (%p115) target = $region21
    $region20: #{tpu_custom_call.1} parent=1 // pred_region
      %v118 = vld [vmem:[#allocation2] sm:$0x1]
      %v119 = vmul.f32 %v118, 0.125
      %120 = vst.msk [vmem:[#allocation2] sm:$0x1] %vm113, %v119
    $region21: #{tpu_custom_call.1} parent=1 // pred_fallthru
      _
    // Predicated region
    $region22: #{tpu_custom_call.1} parent=1 // pred_check
      _
    $region23: #{tpu_custom_call.1} parent=1 // pred_check_branch
      %122 = sbr.rel (0) target = $region25
    $region24: #{tpu_custom_call.1} parent=1 // pred_region
      %s124 = ssub.s32 16, 16
      %125 = vsyncadd [#allocation3], %s124
      %s127 = sshll.u32 [#allocation2], 4
      %s128 = int_to_ptr.vmem [resolvable:$true] %s127
      %130 = dma.vmem_to_hbm [thread:$0]  %s128, 16, %s3, [#allocation3]
    $region25: #{tpu_custom_call.1} parent=1 // pred_fallthru
      _
    // Predicated region
    $region26: #{tpu_custom_call.1} parent=1 // pred_check
      _
    $region27: #{tpu_custom_call.1} parent=1 // pred_check_branch
      %132 = sbr.rel (0) target = $region29
    $region28: #{tpu_custom_call.1} parent=1 // pred_region
      %133 = dma.done [#allocation3], 16
    $region29: #{tpu_custom_call.1} parent=1 // pred_fallthru
      _
    %134 = vsyncpa [#allocation3], 1

</llo_original>
